<compile_context>
chip_gen: v7x
topology: tpu7x:2x2x1
jax: 0.10.0
libtpu: 0.0.40
codegen_flags: <defaults>
</compile_context>

<pallas_src>
import functools

import jax
import jax.numpy as jnp
import numpy as np
from jax.experimental import pallas as pl
from jax.experimental.pallas import tpu as pltpu


def _round_up(a, b):
    return (a + b - 1) // b * b


# ---------------------------------------------------------------------------
# make_cweight (piecewise_linear) — one-time setup (PyTorch caches it); plain
# numpy, constant-folded at trace time.
# ---------------------------------------------------------------------------
def make_cweight(freedom, spatial, oddeven_aligned=True):
    """Returns cw of shape (fh*fw, h, w), float32.

    For type='piecewise_linear' the one-hot + reflect-pad + bilinear
    grid_sample construction reduces exactly to separable hat interpolation
    weights (the reflected copies can never be bilinear neighbours because the
    width coordinate only samples the non-reflected half), which is what is
    built here in closed form.  The oddeven_aligned adjustment applies to the
    height grid only, matching the PyTorch make_cweight.
    """
    # TODO(synk): only type='piecewise_linear' is implemented; 'bicubic'
    # grid_sample has no clean closed-form / Pallas equivalent here.
    fh, fw = freedom
    hs, ws = spatial
    if oddeven_aligned and hs % 2 == 0:
        yg = (np.arange(1, hs + 1, dtype=np.float64) / hs) * 2.0 - 1.0
    else:
        yg = (np.arange(hs, dtype=np.float64) / (hs - 1)) * 2.0 - 1.0
    xg = np.arange(ws, dtype=np.float64) / (ws - 1)
    iy = (yg + 1.0) * 0.5 * (fh - 1)                                           # (hs,)
    jx = xg * (fw - 1)                                                          # (ws,)
    wy = np.maximum(0.0, 1.0 - np.abs(iy[None, :] - np.arange(fh)[:, None]))   # (fh, hs)
    wx = np.maximum(0.0, 1.0 - np.abs(jx[None, :] - np.arange(fw)[:, None]))   # (fw, ws)
    cw = wy[:, None, :, None] * wx[None, :, None, :]                            # (fh, fw, hs, ws)
    return jnp.asarray(cw.reshape(fh * fw, hs, ws), jnp.float32)


# ---------------------------------------------------------------------------
# Pallas kernel: fused heterogeneous 1x1 conv
# ---------------------------------------------------------------------------
def _hetero_filter_kernel(x_ref, cw_ref, w_ref, o_ref):
    # x_ref : (Cin, tm)        pixels on lanes, channels on sublanes
    # cw_ref: (K, tm)          coordinate weights for this spatial tile
    # w_ref : (Cout, Cin*K)    reordered filter bank (resident across the grid)
    # o_ref : (Cout, tm)       lane-dense output tile
    x = x_ref[...]
    cw = cw_ref[...]
    cin, tm = x.shape
    k = cw.shape[0]
    # xw[ci*K + k, m] = x[ci, m] * cw[k, m]: one broadcast multiply; the reshape
    # is layout-free because K is a multiple of the 8 sublanes.  Never hits HBM.
    xw = (x[:, None, :] * cw[None, :, :]).reshape(cin * k, tm)
    # Single MXU matmul does both the channel mixing and the K-reduction.
    o_ref[...] = jnp.dot(
        w_ref[...], xw,
        preferred_element_type=jnp.float32,
        precision=jax.lax.Precision.HIGHEST)


def _default_tile_lanes():
    """Per-generation default spatial tile (lanes). Memory-bound kernel."""
    try:
        kind = jax.devices()[0].device_kind.lower()
    except Exception:
        kind = ""
    if "v5" in kind:
        return 2048   # ~0.82 TB/s HBM: 2048 is already ~roofline; 16 MiB scoped VMEM default
    if "7" in kind:
        return 8192   # v7x: ~3.2 TB/s HBM; larger tiles amortize per-step overhead
    return 4096       # v6e and anything else


def heterogeneous_filter(x, weight, freedom, *, tm=None):
    """x: (bs, Cin, H, W) f32; weight: (Cin, Cout*fh*fw) f32; freedom=(fh, fw)."""
    bs, cin, h, w = x.shape
    fh, fw = freedom
    K = fh * fw
    cout = weight.shape[1] // K
    assert cout * K == weight.shape[1]
    assert cout == cin, "PyTorch view/broadcast requires out_channels == in_channels"

    # Reorder the filter bank once (tiny): W2[co, ci*K + k] = weight[ci, co*K + k].
    w2 = weight.reshape(cin, cout, K).transpose(1, 0, 2).reshape(cout, cin * K)

    hw = h * w
    cw = make_cweight((fh, fw), (h, w)).reshape(K, hw)
    x2 = x.reshape(bs, cin, hw)          # free reshape: NCHW is already channels-major

    if tm is None:
        tm = _default_tile_lanes()
    tm = max(128, min(tm, _round_up(hw, 128)))
    tm = _round_up(tm, 128)              # lane-dense blocks
    num_tiles = pl.cdiv(hw, tm)          # ragged last tile masked by Pallas: no pad, no slice

    # Grid (spatial tiles, batch): batch innermost so cw's block index is constant
    # across consecutive grid steps and Pallas skips re-DMAing it per batch element.
    grid = (num_tiles, bs)
    out = pl.pallas_call(
        _hetero_filter_kernel,
        out_shape=jax.ShapeDtypeStruct((bs, cout, hw), jnp.float32),
        grid=grid,
        in_specs=[
            pl.BlockSpec((None, cin, tm), lambda m, b: (b, 0, m)),
            pl.BlockSpec((K, tm), lambda m, b: (0, m)),          # resident across batch
            pl.BlockSpec((cout, cin * K), lambda m, b: (0, 0)),  # resident always
        ],
        out_specs=pl.BlockSpec((None, cout, tm), lambda m, b: (b, 0, m)),
        compiler_params=pltpu.CompilerParams(
            # Megacore shards the large spatial axis; batch stays sequential so the
            # cw block stays resident (and odd/tiny batches don't idle a core).
            dimension_semantics=("parallel", "arbitrary")),
    )(x2, cw, w2)
    return out.reshape(bs, cout, h, w)


# ---------------------------------------------------------------------------
# Demo / correctness check
# ---------------------------------------------------------------------------
if __name__ == "__main__":
    in_channels = out_channels = 4
    freedom = (4, 4)
    N, H, W = 2, 16, 16

    key = jax.random.PRNGKey(0)
    kx, kw = jax.random.split(key)
    x = jax.random.normal(kx, (N, in_channels, H, W), jnp.float32)
    # PyTorch init is ones; random weights give a stronger numerical check.
    weight = 0.1 * jax.random.normal(
        kw, (in_channels, out_channels * freedom[0] * freedom[1]), jnp.float32)

    fn = jax.jit(functools.partial(heterogeneous_filter, freedom=freedom))
    out = fn(x, weight)
    jax.block_until_ready(out)

    # Reference: the PyTorch graph (1x1 conv -> view -> *cw -> sum(2)) in plain JAX.
    K = freedom[0] * freedom[1]
    cw_ref = make_cweight(freedom, (H, W))
    y = jnp.einsum("bihw,id->bdhw", x, weight,
                   precision=jax.lax.Precision.HIGHEST)
    y = y.reshape(N, in_channels, K, H, W)
    ref = (y * cw_ref[None, None]).sum(2)

    assert out.shape == (N, out_channels, H, W), out.shape
    assert out.dtype == jnp.float32
    err = float(jnp.max(jnp.abs(out - ref)))
    assert err < 2e-3, f"max abs error {err}"
    print("KERNEL_OK")
</pallas_src>

<mosaic_0001>
module attributes {stable_mosaic.version = 11 : i64} {
  func.func @_hetero_filter_kernel(%arg0: i32, %arg1: i32, %arg2: memref<1x4x256xf32, #tpu.memory_space<vmem>>, %arg3: memref<16x256xf32, #tpu.memory_space<vmem>>, %arg4: memref<4x64xf32, #tpu.memory_space<vmem>>, %arg5: memref<1x4x256xf32, #tpu.memory_space<vmem>>) attributes {dimension_semantics = [#tpu.dimension_semantics<parallel>, #tpu.dimension_semantics<arbitrary>], iteration_bounds = array<i64: 1, 2>, scalar_prefetch = 0 : i64, scratch_operands = 0 : i64, tpu.core_type = #tpu.core_type<tc>, window_params = [{transform_indices = @transform_0, window_bounds = array<i64: 1, 4, 256>}, {transform_indices = @transform_1, window_bounds = array<i64: 16, 256>}, {pipeline_mode = #tpu.pipeline_mode<synchronous>, transform_indices = @transform_2, window_bounds = array<i64: 4, 64>}, {transform_indices = @transform_3, window_bounds = array<i64: 1, 4, 256>}]} {
    %c0 = arith.constant 0 : index
    %c0_0 = arith.constant 0 : index
    %c0_1 = arith.constant 0 : index
    %0 = vector.load %arg2[%c0, %c0_0, %c0_1] : memref<1x4x256xf32, #tpu.memory_space<vmem>>, vector<1x4x256xf32>
    %1 = vector.shape_cast %0 : vector<1x4x256xf32> to vector<4x256xf32>
    %c0_2 = arith.constant 0 : index
    %c0_3 = arith.constant 0 : index
    %2 = vector.load %arg3[%c0_2, %c0_3] : memref<16x256xf32, #tpu.memory_space<vmem>>, vector<16x256xf32>
    %3 = vector.shape_cast %1 : vector<4x256xf32> to vector<4x1x256xf32>
    %4 = vector.shape_cast %2 : vector<16x256xf32> to vector<1x16x256xf32>
    %5 = vector.broadcast %3 : vector<4x1x256xf32> to vector<4x16x256xf32>
    %6 = vector.broadcast %4 : vector<1x16x256xf32> to vector<4x16x256xf32>
    %7 = arith.mulf %5, %6 : vector<4x16x256xf32>
    %8 = vector.shape_cast %7 : vector<4x16x256xf32> to vector<64x256xf32>
    %c0_4 = arith.constant 0 : index
    %c0_5 = arith.constant 0 : index
    %9 = vector.load %arg4[%c0_4, %c0_5] : memref<4x64xf32, #tpu.memory_space<vmem>>, vector<4x64xf32>
    %cst = arith.constant dense<0.000000e+00> : vector<4x256xf32>
    %10 = tpu.matmul %9, %8, %cst {dimension_numbers = #tpu.dot_dimension_numbers<[1], [0], [0], [1], [0, 0, 1, 1], [], []>, precision = #tpu.contract_precision<fp32>} : vector<4x64xf32>, vector<64x256xf32>, vector<4x256xf32> -> vector<4x256xf32>
    %c0_6 = arith.constant 0 : index
    %c0_7 = arith.constant 0 : index
    %c0_8 = arith.constant 0 : index
    %11 = vector.load %arg5[%c0_6, %c0_7, %c0_8] : memref<1x4x256xf32, #tpu.memory_space<vmem>>, vector<1x4x256xf32>
    %12 = vector.shape_cast %11 : vector<1x4x256xf32> to vector<4x256xf32>
    %13 = vector.shape_cast %10 : vector<4x256xf32> to vector<1x4x256xf32>
    tpu.vector_store %arg5[%c0_6, %c0_7, %c0_8], %13 {strides = array<i32>} : memref<1x4x256xf32, #tpu.memory_space<vmem>>, vector<1x4x256xf32>,
    return
  }
  func.func @transform_0(%arg0: i32, %arg1: i32) -> (i32, i32, i32) {
    %c0_i32 = arith.constant 0 : i32
    %c0_i32_0 = arith.constant 0 : i32
    return %arg1, %c0_i32, %arg0 : i32, i32, i32
  }
  func.func @transform_1(%arg0: i32, %arg1: i32) -> (i32, i32) {
    %c0_i32 = arith.constant 0 : i32
    %c0_i32_0 = arith.constant 0 : i32
    return %c0_i32, %arg0 : i32, i32
  }
  func.func @transform_2(%arg0: i32, %arg1: i32) -> (i32, i32) {
    %c0_i32 = arith.constant 0 : i32
    %c0_i32_0 = arith.constant 0 : i32
    %c0_i32_1 = arith.constant 0 : i32
    return %c0_i32, %c0_i32_0 : i32, i32
  }
  func.func @transform_3(%arg0: i32, %arg1: i32) -> (i32, i32, i32) {
    %c0_i32 = arith.constant 0 : i32
    %c0_i32_0 = arith.constant 0 : i32
    return %arg1, %c0_i32, %arg0 : i32, i32, i32
  }
}

</mosaic_0001>

<llo_original>
// kernel: heterogeneous_filter.1
$region0: #{heterogeneous_filter.1}
  #allocation0 [shape = 'u32[]', space=smem, size = 0x4, offset = 0x4, fixed_abs, tag = 'smem constant byte address 0x4 - core index']
  #allocation1 [shape = 'u32[144,128]{1,0:T(1,128)}', space=vmem, size = 0x12000, scoped, tag = 'internal scratch']
  %s0 = inlined_call_operand.vmem [shape: f32[2,4,256], index: 0, kind: input, shape index: {}]
  %s1 = inlined_call_operand.vmem [shape: f32[16,256], index: 1, kind: input, shape index: {}]
  %s2 = inlined_call_operand.vmem [shape: f32[4,64], index: 2, kind: input, shape index: {}]
  %s3 = inlined_call_operand.vmem [shape: f32[2,4,256], index: 3, kind: output, shape index: {}]
  %s4 = sld [smem:[#allocation0]]
  $region45: #{heterogeneous_filter.1} parent=0
    _
  %s6 = ssub.s32 1, %s4
  %s7 = scalar_select 0, %s6, %s4
  loop: start=0, step=1, limit=4
  $region2: #{heterogeneous_filter.1} parent=0 // loop_pre_header
    _
  $region3: #{heterogeneous_filter.1} parent=0 // loop_header
    %s9 = sphi 0, %s13
    %p10 = scmp.ge.s32.totalorder %s9, 4
    %s16 = sphi 0, %s28
    %s17 = sphi 0, %s24
    %s18 = sphi 0, %s16
    %s19 = sphi 0, %s17
    %s20 = sphi 0, %s18
    %s21 = sphi 0, %s19
    %s33 = sphi 0, %s35
    %s36 = sphi 0, %s33
    %s37 = sphi 0, %s36
    %s53 = sphi 0, %s37
    %s59 = sphi 0, %s61
    %s62 = sphi 0, %s59
    %s63 = sphi 0, %s62
    %s79 = sphi 0, %s63
    %s83 = sphi 0, %s83
    %s85 = sphi 0, %s83
    %s86 = sphi 0, %s85
    %s100 = sphi 0, %s86
    %s108 = sphi 0, %s110
    %s111 = sphi 0, %s108
    %s112 = sphi 0, %s111
    %s128 = sphi 0, %s112
  $region4: #{heterogeneous_filter.1} parent=0 // loop_header_branch
    %12 = sbr.rel (%p10) target = $region8
  $region5: #{heterogeneous_filter.1} parent=0 // loop_body
    %s14 = ssub.s32 %s9, 1
    %s15 = ssub.s32 %s9, 2
    %s22 = sadd.s32 1, %s17
    %p23 = scmp.ge.s32.totalorder %s22, 2
    %s24 = scalar_select %p23, 0, %s22
    %s25 = sadd.s32 1, %s16
    %s26 = scalar_select %p23, %s25, %s16
    %p27 = scmp.ge.s32.totalorder %s26, 1
    %s28 = scalar_select %p27, 0, %s26
    %s29 = ssub.s32 %s17, %s24
    %s30 = ssub.s32 %s16, %s28
    %s31 = sor.u32 %s29, %s30
    %p32 = scmp.eq.s32.totalorder %s31, 0
    %s34 = sadd.s32 %s33, 1
    %s35 = scalar_select %p32, %s33, %s34
    %p38 = pneg %p32
    %p39 = scmp.eq.s32.totalorder %s9, 1
    %p40 = por %p38, %p39
    %p41 = scmp.ne.s32.totalorder %s33, %s36
    %p42 = scmp.eq.s32.totalorder %s9, 0
    %p43 = por %p41, %p42
    %p44 = scmp.ne.s32.totalorder %s33, %s36
    %p45 = scmp.eq.s32.totalorder %s14, 1
    %p46 = por %p44, %p45
    %p47 = scmp.ne.s32.totalorder %s36, %s37
    %p48 = scmp.eq.s32.totalorder %s14, 0
    %p49 = por %p47, %p48
    %p50 = scmp.ne.s32.totalorder %s36, %s37
    %p51 = scmp.eq.s32.totalorder %s15, 1
    %p52 = por %p50, %p51
    %p54 = scmp.ne.s32.totalorder %s37, %s53
    %p55 = scmp.eq.s32.totalorder %s15, 0
    %p56 = por %p54, %p55
    %s57 = ssub.s32 %s16, %s28
    %p58 = scmp.eq.s32.totalorder %s57, 0
    %s60 = sadd.s32 %s59, 1
    %s61 = scalar_select %p58, %s59, %s60
    %p64 = pneg %p58
    %p65 = scmp.eq.s32.totalorder %s9, 1
    %p66 = por %p64, %p65
    %p67 = scmp.ne.s32.totalorder %s59, %s62
    %p68 = scmp.eq.s32.totalorder %s9, 0
    %p69 = por %p67, %p68
    %p70 = scmp.ne.s32.totalorder %s59, %s62
    %p71 = scmp.eq.s32.totalorder %s14, 1
    %p72 = por %p70, %p71
    %p73 = scmp.ne.s32.totalorder %s62, %s63
    %p74 = scmp.eq.s32.totalorder %s14, 0
    %p75 = por %p73, %p74
    %p76 = scmp.ne.s32.totalorder %s62, %s63
    %p77 = scmp.eq.s32.totalorder %s15, 1
    %p78 = por %p76, %p77
    %p80 = scmp.ne.s32.totalorder %s63, %s79
    %p81 = scmp.eq.s32.totalorder %s15, 0
    %p82 = por %p80, %p81
    %s84 = sadd.s32 %s83, 1
    %p87 = scmp.eq.s32.totalorder %s9, 1
    %p88 = scmp.ne.s32.totalorder %s83, %s85
    %p89 = scmp.eq.s32.totalorder %s9, 0
    %p90 = por %p88, %p89
    %p91 = scmp.ne.s32.totalorder %s83, %s85
    %p92 = scmp.eq.s32.totalorder %s14, 1
    %p93 = por %p91, %p92
    %p94 = scmp.ne.s32.totalorder %s85, %s86
    %p95 = scmp.eq.s32.totalorder %s14, 0
    %p96 = por %p94, %p95
    %p97 = scmp.ne.s32.totalorder %s85, %s86
    %p98 = scmp.eq.s32.totalorder %s15, 1
    %p99 = por %p97, %p98
    %p101 = scmp.ne.s32.totalorder %s86, %s100
    %p102 = scmp.eq.s32.totalorder %s15, 0
    %p103 = por %p101, %p102
    %s104 = ssub.s32 %s17, %s24
    %s105 = ssub.s32 %s16, %s28
    %s106 = sor.u32 %s104, %s105
    %p107 = scmp.eq.s32.totalorder %s106, 0
    %s109 = sadd.s32 %s108, 1
    %s110 = scalar_select %p107, %s108, %s109
    %p113 = pneg %p107
    %p114 = scmp.eq.s32.totalorder %s9, 1
    %p115 = por %p113, %p114
    %p116 = scmp.ne.s32.totalorder %s108, %s111
    %p117 = scmp.eq.s32.totalorder %s9, 0
    %p118 = por %p116, %p117
    %p119 = scmp.ne.s32.totalorder %s108, %s111
    %p120 = scmp.eq.s32.totalorder %s14, 1
    %p121 = por %p119, %p120
    %p122 = scmp.ne.s32.totalorder %s111, %s112
    %p123 = scmp.eq.s32.totalorder %s14, 0
    %p124 = por %p122, %p123
    %p125 = scmp.ne.s32.totalorder %s111, %s112
    %p126 = scmp.eq.s32.totalorder %s15, 1
    %p127 = por %p125, %p126
    %p129 = scmp.ne.s32.totalorder %s112, %s128
    %p130 = scmp.eq.s32.totalorder %s15, 0
    %p131 = por %p129, %p130
    %p132 = scmp.le.s32.totalorder 1, %s9
    %p133 = scmp.lt.s32.totalorder %s9, 3
    %p134 = pnand %p132, %p133
    %p135 = pneg %p134
    // Predicated region
    $region9: #{heterogeneous_filter.1} parent=5 // pred_check
      _
    $region10: #{heterogeneous_filter.1} parent=5 // pred_check_branch
      %137 = sbr.rel (%p134) target = $region12
    $region11: #{heterogeneous_filter.1} parent=5 // pred_region
      %s138 = ssub.s32 %s9, 1
      // Predicated region
      $region13: #{heterogeneous_filter.1} parent=11 // pred_check
        %p139 = pneg %p75
      $region14: #{heterogeneous_filter.1} parent=11 // pred_check_branch
        %141 = sbr.rel (%p139) target = $region16
      $region15: #{heterogeneous_filter.1} parent=11 // pred_region
        %s142 = smul.u32 2, %s18
        %p143 = scmp.lt.s32.totalorder %s142, 1
        %s144 = scalar_select %p143, %s142, 1
        %s145 = smul.addr %s144, 8
        %s146 = scalar_lea.vmem %s1, %s145
        %s147 = smul.u32 2, %s18
      $region16: #{heterogeneous_filter.1} parent=11 // pred_fallthru
        _
      // Predicated region
      $region17: #{heterogeneous_filter.1} parent=11 // pred_check
        %p148 = pneg %p96
      $region18: #{heterogeneous_filter.1} parent=11 // pred_check_branch
        %150 = sbr.rel (%p148) target = $region20
      $region19: #{heterogeneous_filter.1} parent=11 // pred_region
        _
      $region20: #{heterogeneous_filter.1} parent=11 // pred_fallthru
        _
    $region12: #{heterogeneous_filter.1} parent=5 // pred_fallthru
      _
    %p151 = scmp.lt.s32.totalorder %s9, 2
    // Predicated region
    $region21: #{heterogeneous_filter.1} parent=5 // pred_check
      %p152 = pneg %p151
    $region22: #{heterogeneous_filter.1} parent=5 // pred_check_branch
      %154 = sbr.rel (%p152) target = $region24
    $region23: #{heterogeneous_filter.1} parent=5 // pred_region
      // Predicated region
      $region25: #{heterogeneous_filter.1} parent=23 // pred_check
        %p155 = pneg %p43
      $region26: #{heterogeneous_filter.1} parent=23 // pred_check_branch
        %157 = sbr.rel (%p155) target = $region28
      $region27: #{heterogeneous_filter.1} parent=23 // pred_region
        %s158 = smul.u32 2, %s16
        %p159 = scmp.lt.s32.totalorder %s17, 1
        %s160 = scalar_select %p159, %s17, 1
        %p161 = scmp.lt.s32.totalorder %s158, 1
        %s162 = scalar_select %p161, %s158, 1
        %s163 = smul.addr %s160, 2
        %s164 = sadd.s32 %s162, %s163
        %s165 = smul.addr %s164, 4
        %s166 = scalar_lea.vmem %s0, %s165
        %s167 = smul.u32 2, %s16
      $region28: #{heterogeneous_filter.1} parent=23 // pred_fallthru
        _
    $region24: #{heterogeneous_filter.1} parent=5 // pred_fallthru
      _
    %p168 = scmp.le.s32.totalorder 1, %s9
    %p169 = scmp.lt.s32.totalorder %s9, 3
    %p170 = pnand %p168, %p169
    %p171 = pneg %p170
    // Predicated region
    $region29: #{heterogeneous_filter.1} parent=5 // pred_check
      _
    $region30: #{heterogeneous_filter.1} parent=5 // pred_check_branch
      %173 = sbr.rel (%p170) target = $region32
    $region31: #{heterogeneous_filter.1} parent=5 // pred_region
      %s174 = ssub.s32 %s9, 1
      %s175 = smul.u32 2, %s18
      %p176 = scmp.lt.s32.totalorder %s19, 1
      %s177 = scalar_select %p176, %s19, 1
      %p178 = scmp.lt.s32.totalorder %s175, 1
      %s179 = scalar_select %p178, %s175, 1
      %s180 = smul.addr %s177, 2
      %s181 = sadd.s32 %s179, %s180
      %s182 = smul.addr %s181, 4
      %s183 = scalar_lea.vmem %s0, %s182
      %p184 = pneg %p49
      %p185 = pneg %p46
      %s186 = smul.u32 2, %s18
      %p187 = scmp.lt.s32.totalorder %s186, 1
      %s188 = scalar_select %p187, %s186, 1
      %s189 = smul.addr %s188, 8
      %s190 = scalar_lea.vmem %s1, %s189
      %p191 = pneg %p75
      %p192 = pneg %p72
      %p193 = pneg %p96
      %p194 = pneg %p93
      %p195 = pneg %p124
      %p196 = pneg %p121
      %s197 = smul.u32 2, %s18
      %p198 = scmp.lt.s32.totalorder %s19, 1
      %s199 = scalar_select %p198, %s19, 1
      %p200 = scmp.lt.s32.totalorder %s197, 1
      %s201 = scalar_select %p200, %s197, 1
      %s202 = smul.addr %s199, 2
      %s203 = sadd.s32 %s201, %s202
      %s204 = smul.addr %s203, 4
      %s205 = scalar_lea.vmem %s3, %s204
      %s206 = smul.u32 2, %s18
      %p207 = scmp.lt.s32.totalorder %s19, 1
      %s208 = scalar_select %p207, %s19, 1
      %p209 = scmp.lt.s32.totalorder %s206, 1
      %s210 = scalar_select %p209, %s206, 1
      %s211 = smul.addr %s208, 2
      %s212 = sadd.s32 %s210, %s211
      %s213 = smul.addr %s212, 4
      %s214 = scalar_lea.vmem %s0, %s213
      %s215 = smul.u32 2, %s18
      %s216 = smul.u32 2, %s18
      %p217 = scmp.lt.s32.totalorder %s216, 1
      %s218 = scalar_select %p217, %s216, 1
      %s219 = smul.addr %s218, 8
      %s220 = scalar_lea.vmem %s1, %s219
      %s221 = smul.u32 2, %s18
      %s222 = smul.u32 2, %s18
      %p223 = scmp.lt.s32.totalorder %s19, 1
      %s224 = scalar_select %p223, %s19, 1
      %p225 = scmp.lt.s32.totalorder %s222, 1
      %s226 = scalar_select %p225, %s222, 1
      %s227 = smul.addr %s224, 2
      %s228 = sadd.s32 %s226, %s227
      %s229 = smul.addr %s228, 4
      %s230 = scalar_lea.vmem %s3, %s229
      %s231 = smul.u32 2, %s18
      %v232 = vld [vmem:[%s214] sm:$0xff]
      %v233 = vld [vmem:[%s220] sm:$0xff]
      %v234 = vld [vmem:[%s220 + $0x8] sm:$0xff]
      %v235 = vld [vmem:[%s220 + $0x10] sm:$0xff]
      %v236 = vld [vmem:[%s220 + $0x18] sm:$0xff]
      %v239 = vunpack.c.l.s4 1966171168
      %v240 = vunpack.c.0.s8 %v239
      %v241 = vlaneseq
      %v242 = vshrl.u32 %v241, 7
      %v243 = vsub.s32 %v240, %v242
      %v244 = vrot.slane %v232, %v243
      %v245 = vcombine.high %v244, %v244
      %v247 = vunpack.c.l.s4 1966171168
      %v248 = vunpack.c.0.s8 %v247
      %v249 = vlaneseq
      %v250 = vshrl.u32 %v249, 7
      %v251 = vsub.s32 %v248, %v250
      %v252 = vrot.slane %v244, %v251
      %v254 = vunpack.c.l.s4 1966171168
      %v255 = vunpack.c.0.s8 %v254
      %v256 = vlaneseq
      %v257 = vshrl.u32 %v256, 7
      %v258 = vsub.s32 %v255, %v257
      %v259 = vrot.slane %v245, %v258
      %v260 = vcombine.high %v252, %v252
      %v261 = vcombine.high %v259, %v259
      %v262 = vlaneseq
      %v263 = vshrl.u32 %v262, 7
      %v264 = vsub.s32 0, %v263
      %v265 = vrot.slane %v252, %v264
      %v266 = vlaneseq
      %v267 = vshrl.u32 %v266, 7
      %v268 = vsub.s32 1, %v267
      %v269 = vrot.slane %v252, %v268
      %v270 = vlaneseq
      %v271 = vshrl.u32 %v270, 7
      %v272 = vsub.s32 0, %v271
      %v273 = vrot.slane %v259, %v272
      %v274 = vlaneseq
      %v275 = vshrl.u32 %v274, 7
      %v276 = vsub.s32 1, %v275
      %v277 = vrot.slane %v259, %v276
      %v278 = vlaneseq
      %v279 = vshrl.u32 %v278, 7
      %v280 = vsub.s32 0, %v279
      %v281 = vrot.slane %v260, %v280
      %v282 = vlaneseq
      %v283 = vshrl.u32 %v282, 7
      %v284 = vsub.s32 1, %v283
      %v285 = vrot.slane %v260, %v284
      %v286 = vlaneseq
      %v287 = vshrl.u32 %v286, 7
      %v288 = vsub.s32 0, %v287
      %v289 = vrot.slane %v261, %v288
      %v290 = vlaneseq
      %v291 = vshrl.u32 %v290, 7
      %v292 = vsub.s32 1, %v291
      %v293 = vrot.slane %v261, %v292
      %v302 = vmul.f32 %v265, %v233
      %v303 = vmul.f32 %v269, %v234
      %v304 = vmul.f32 %v265, %v235
      %v305 = vmul.f32 %v269, %v236
      %v306 = vmul.f32 %v273, %v233
      %v307 = vmul.f32 %v277, %v234
      %v308 = vmul.f32 %v273, %v235
      %v309 = vmul.f32 %v277, %v236
      %v310 = vmul.f32 %v281, %v233
      %v311 = vmul.f32 %v285, %v234
      %v312 = vmul.f32 %v281, %v235
      %v313 = vmul.f32 %v285, %v236
      %v314 = vmul.f32 %v289, %v233
      %v315 = vmul.f32 %v293, %v234
      %v316 = vmul.f32 %v289, %v235
      %v317 = vmul.f32 %v293, %v236
      %v318 = vld [vmem:[%s2] sm:$0xf]
      %vm319 = vcmask 523264
      %v321 = vsel %vm319, %v318, 0
      %v323 = vand.u32 %v303, 4294901760
      %324 = vmatprep.subr.mxu0 %v323
      %v325 = vand.u32 %v302, 4294901760
      %326 = vmatpush1.msra.mxu0 %v325
      %v327 = vand.u32 %v305, 4294901760
      %328 = vmatprep.subr.mxu0 %v327
      %v329 = vand.u32 %v304, 4294901760
      %330 = vmatpush1.msra.mxu0 %v329
      %v331 = vand.u32 %v307, 4294901760
      %332 = vmatprep.subr.mxu0 %v331
      %v333 = vand.u32 %v306, 4294901760
      %334 = vmatpush1.msra.mxu0 %v333
      %v335 = vand.u32 %v309, 4294901760
      %336 = vmatprep.subr.mxu0 %v335
      %v337 = vand.u32 %v308, 4294901760
      %338 = vmatpush1.msra.mxu0 %v337
      %v339 = vand.u32 %v311, 4294901760
      %340 = vmatprep.subr.mxu0 %v339
      %v341 = vand.u32 %v310, 4294901760
      %342 = vmatpush1.msra.mxu0 %v341
      %v343 = vand.u32 %v313, 4294901760
      %344 = vmatprep.subr.mxu0 %v343
      %v345 = vand.u32 %v312, 4294901760
      %346 = vmatpush1.msra.mxu0 %v345
      %v347 = vand.u32 %v315, 4294901760
      %348 = vmatprep.subr.mxu0 %v347
      %v349 = vand.u32 %v314, 4294901760
      %350 = vmatpush1.msra.mxu0 %v349
      %v351 = vand.u32 %v317, 4294901760
      %352 = vmatprep.subr.mxu0 %v351
      %v353 = vand.u32 %v316, 4294901760
      %354 = vmatpush1.msra.mxu0 %v353
      %355 = vmatprep.subr.mxu0 0.0
      %356 = vmatpush1.msra.mxu0 0.0
      %357 = vmatprep.subr.mxu0 0.0
      %358 = vmatpush1.msra.mxu0 0.0
      %359 = vmatprep.subr.mxu0 0.0
      %360 = vmatpush1.msra.mxu0 0.0
      %361 = vmatprep.subr.mxu0 0.0
      %362 = vmatpush1.msra.mxu0 0.0
      %363 = vmatprep.subr.mxu0 0.0
      %364 = vmatpush1.msra.mxu0 0.0
      %365 = vmatprep.subr.mxu0 0.0
      %366 = vmatpush1.msra.mxu0 0.0
      %367 = vmatprep.subr.mxu0 0.0
      %368 = vmatpush1.msra.mxu0 0.0
      %369 = vmatprep.subr.mxu0 0.0
      %370 = vmatpush1.msra.mxu0 0.0
      %371 = vmatprep.subr.mxu0 0.0
      %372 = vmatpush1.msra.mxu0 0.0
      %373 = vmatprep.subr.mxu0 0.0
      %374 = vmatpush1.msra.mxu0 0.0
      %375 = vmatprep.subr.mxu0 0.0
      %376 = vmatpush1.msra.mxu0 0.0
      %377 = vmatprep.subr.mxu0 0.0
      %378 = vmatpush1.msra.mxu0 0.0
      %379 = vmatprep.subr.mxu0 0.0
      %380 = vmatpush1.msra.mxu0 0.0
      %381 = vmatprep.subr.mxu0 0.0
      %382 = vmatpush1.msra.mxu0 0.0
      %383 = vmatprep.subr.mxu0 0.0
      %384 = vmatpush1.msra.mxu0 0.0
      %385 = vmatprep.subr.mxu0 0.0
      %386 = vmatpush1.msra.mxu0 0.0
      %387 = vmatprep.subr.mxu0 0.0
      %388 = vmatpush1.msra.mxu0 0.0
      %389 = vmatprep.subr.mxu0 0.0
      %390 = vmatpush1.msra.mxu0 0.0
      %391 = vmatprep.subr.mxu0 0.0
      %392 = vmatpush1.msra.mxu0 0.0
      %393 = vmatprep.subr.mxu0 0.0
      %394 = vmatpush1.msra.mxu0 0.0
      %395 = vmatprep.subr.mxu0 0.0
      %396 = vmatpush1.msra.mxu0 0.0
      %397 = vmatprep.subr.mxu0 0.0
      %398 = vmatpush1.msra.mxu0 0.0
      %399 = vmatprep.subr.mxu0 0.0
      %400 = vmatpush1.msra.mxu0 0.0
      %401 = vmatprep.subr.mxu0 0.0
      %402 = vmatpush1.msra.mxu0 0.0
      %403 = vmatprep.mubr.f32.mxu0 0.0
      %v404 = vand.u32 %v321, 4294901760
      %v405 = vsub.f32 %v321, %v404
      %v406 = vand.u32 %v405, 4294901760
      %v407 = vsub.f32 %v405, %v406
      %v408 = vand.u32 %v407, 4294901760
      %409 = vmatmul.mubr.f32.gmra.mrb[0].mxu0 %v408
      %v410 = vpop.f32.mrb[0].mxu0
      %v411 = vadd.f32 0.0, %v410
      %v412 = vpop.f32.mrb[0].mxu0
      %v413 = vadd.f32 0.0, %v412
      %414 = vdwg.mxu0
      %v415 = vand.u32 %v303, 4294901760
      %v416 = vsub.f32 %v303, %v415
      %v417 = vand.u32 %v416, 4294901760
      %v418 = vsub.f32 %v416, %v417
      %v419 = vand.u32 %v418, 4294901760
      %420 = vmatprep.subr.mxu0 %v419
      %v421 = vand.u32 %v302, 4294901760
      %v422 = vsub.f32 %v302, %v421
      %v423 = vand.u32 %v422, 4294901760
      %v424 = vsub.f32 %v422, %v423
      %v425 = vand.u32 %v424, 4294901760
      %426 = vmatpush1.msra.mxu0 %v425
      %v427 = vand.u32 %v305, 4294901760
      %v428 = vsub.f32 %v305, %v427
      %v429 = vand.u32 %v428, 4294901760
      %v430 = vsub.f32 %v428, %v429
      %v431 = vand.u32 %v430, 4294901760
      %432 = vmatprep.subr.mxu0 %v431
      %v433 = vand.u32 %v304, 4294901760
      %v434 = vsub.f32 %v304, %v433
      %v435 = vand.u32 %v434, 4294901760
      %v436 = vsub.f32 %v434, %v435
      %v437 = vand.u32 %v436, 4294901760
      %438 = vmatpush1.msra.mxu0 %v437
      %v439 = vand.u32 %v307, 4294901760
      %v440 = vsub.f32 %v307, %v439
      %v441 = vand.u32 %v440, 4294901760
      %v442 = vsub.f32 %v440, %v441
      %v443 = vand.u32 %v442, 4294901760
      %444 = vmatprep.subr.mxu0 %v443
      %v445 = vand.u32 %v306, 4294901760
      %v446 = vsub.f32 %v306, %v445
      %v447 = vand.u32 %v446, 4294901760
      %v448 = vsub.f32 %v446, %v447
      %v449 = vand.u32 %v448, 4294901760
      %450 = vmatpush1.msra.mxu0 %v449
      %v451 = vand.u32 %v309, 4294901760
      %v452 = vsub.f32 %v309, %v451
      %v453 = vand.u32 %v452, 4294901760
      %v454 = vsub.f32 %v452, %v453
      %v455 = vand.u32 %v454, 4294901760
      %456 = vmatprep.subr.mxu0 %v455
      %v457 = vand.u32 %v308, 4294901760
      %v458 = vsub.f32 %v308, %v457
      %v459 = vand.u32 %v458, 4294901760
      %v460 = vsub.f32 %v458, %v459
      %v461 = vand.u32 %v460, 4294901760
      %462 = vmatpush1.msra.mxu0 %v461
      %v463 = vand.u32 %v311, 4294901760
      %v464 = vsub.f32 %v311, %v463
      %v465 = vand.u32 %v464, 4294901760
      %v466 = vsub.f32 %v464, %v465
      %v467 = vand.u32 %v466, 4294901760
      %468 = vmatprep.subr.mxu0 %v467
      %v469 = vand.u32 %v310, 4294901760
      %v470 = vsub.f32 %v310, %v469
      %v471 = vand.u32 %v470, 4294901760
      %v472 = vsub.f32 %v470, %v471
      %v473 = vand.u32 %v472, 4294901760
      %474 = vmatpush1.msra.mxu0 %v473
      %v475 = vand.u32 %v313, 4294901760
      %v476 = vsub.f32 %v313, %v475
      %v477 = vand.u32 %v476, 4294901760
      %v478 = vsub.f32 %v476, %v477
      %v479 = vand.u32 %v478, 4294901760
      %480 = vmatprep.subr.mxu0 %v479
      %v481 = vand.u32 %v312, 4294901760
      %v482 = vsub.f32 %v312, %v481
      %v483 = vand.u32 %v482, 4294901760
      %v484 = vsub.f32 %v482, %v483
      %v485 = vand.u32 %v484, 4294901760
      %486 = vmatpush1.msra.mxu0 %v485
      %v487 = vand.u32 %v315, 4294901760
      %v488 = vsub.f32 %v315, %v487
      %v489 = vand.u32 %v488, 4294901760
      %v490 = vsub.f32 %v488, %v489
      %v491 = vand.u32 %v490, 4294901760
      %492 = vmatprep.subr.mxu0 %v491
      %v493 = vand.u32 %v314, 4294901760
      %v494 = vsub.f32 %v314, %v493
      %v495 = vand.u32 %v494, 4294901760
      %v496 = vsub.f32 %v494, %v495
      %v497 = vand.u32 %v496, 4294901760
      %498 = vmatpush1.msra.mxu0 %v497
      %v499 = vand.u32 %v317, 4294901760
      %v500 = vsub.f32 %v317, %v499
      %v501 = vand.u32 %v500, 4294901760
      %v502 = vsub.f32 %v500, %v501
      %v503 = vand.u32 %v502, 4294901760
      %504 = vmatprep.subr.mxu0 %v503
      %v505 = vand.u32 %v316, 4294901760
      %v506 = vsub.f32 %v316, %v505
      %v507 = vand.u32 %v506, 4294901760
      %v508 = vsub.f32 %v506, %v507
      %v509 = vand.u32 %v508, 4294901760
      %510 = vmatpush1.msra.mxu0 %v509
      %511 = vmatprep.subr.mxu0 0.0
      %512 = vmatpush1.msra.mxu0 0.0
      %513 = vmatprep.subr.mxu0 0.0
      %514 = vmatpush1.msra.mxu0 0.0
      %515 = vmatprep.subr.mxu0 0.0
      %516 = vmatpush1.msra.mxu0 0.0
      %517 = vmatprep.subr.mxu0 0.0
      %518 = vmatpush1.msra.mxu0 0.0
      %519 = vmatprep.subr.mxu0 0.0
      %520 = vmatpush1.msra.mxu0 0.0
      %521 = vmatprep.subr.mxu0 0.0
      %522 = vmatpush1.msra.mxu0 0.0
      %523 = vmatprep.subr.mxu0 0.0
      %524 = vmatpush1.msra.mxu0 0.0
      %525 = vmatprep.subr.mxu0 0.0
      %526 = vmatpush1.msra.mxu0 0.0
      %527 = vmatprep.subr.mxu0 0.0
      %528 = vmatpush1.msra.mxu0 0.0
      %529 = vmatprep.subr.mxu0 0.0
      %530 = vmatpush1.msra.mxu0 0.0
      %531 = vmatprep.subr.mxu0 0.0
      %532 = vmatpush1.msra.mxu0 0.0
      %533 = vmatprep.subr.mxu0 0.0
      %534 = vmatpush1.msra.mxu0 0.0
      %535 = vmatprep.subr.mxu0 0.0
      %536 = vmatpush1.msra.mxu0 0.0
      %537 = vmatprep.subr.mxu0 0.0
      %538 = vmatpush1.msra.mxu0 0.0
      %539 = vmatprep.subr.mxu0 0.0
      %540 = vmatpush1.msra.mxu0 0.0
      %541 = vmatprep.subr.mxu0 0.0
      %542 = vmatpush1.msra.mxu0 0.0
      %543 = vmatprep.subr.mxu0 0.0
      %544 = vmatpush1.msra.mxu0 0.0
      %545 = vmatprep.subr.mxu0 0.0
      %546 = vmatpush1.msra.mxu0 0.0
      %547 = vmatprep.subr.mxu0 0.0
      %548 = vmatpush1.msra.mxu0 0.0
      %549 = vmatprep.subr.mxu0 0.0
      %550 = vmatpush1.msra.mxu0 0.0
      %551 = vmatprep.subr.mxu0 0.0
      %552 = vmatpush1.msra.mxu0 0.0
      %553 = vmatprep.subr.mxu0 0.0
      %554 = vmatpush1.msra.mxu0 0.0
      %555 = vmatprep.subr.mxu0 0.0
      %556 = vmatpush1.msra.mxu0 0.0
      %557 = vmatprep.subr.mxu0 0.0
      %558 = vmatpush1.msra.mxu0 0.0
      %559 = vmatprep.mubr.f32.mxu0 0.0
      %v560 = vand.u32 %v321, 4294901760
      %561 = vmatmul.mubr.f32.gmra.mrb[0].mxu0 %v560
      %v562 = vpop.f32.mrb[0].mxu0
      %v563 = vadd.f32 %v411, %v562
      %v564 = vpop.f32.mrb[0].mxu0
      %v565 = vadd.f32 %v413, %v564
      %566 = vdwg.mxu0
      %v567 = vand.u32 %v303, 4294901760
      %v568 = vsub.f32 %v303, %v567
      %569 = vmatprep.subr.mxu0 %v568
      %v570 = vand.u32 %v302, 4294901760
      %v571 = vsub.f32 %v302, %v570
      %572 = vmatpush1.msra.mxu0 %v571
      %v573 = vand.u32 %v305, 4294901760
      %v574 = vsub.f32 %v305, %v573
      %575 = vmatprep.subr.mxu0 %v574
      %v576 = vand.u32 %v304, 4294901760
      %v577 = vsub.f32 %v304, %v576
      %578 = vmatpush1.msra.mxu0 %v577
      %v579 = vand.u32 %v307, 4294901760
      %v580 = vsub.f32 %v307, %v579
      %581 = vmatprep.subr.mxu0 %v580
      %v582 = vand.u32 %v306, 4294901760
      %v583 = vsub.f32 %v306, %v582
      %584 = vmatpush1.msra.mxu0 %v583
      %v585 = vand.u32 %v309, 4294901760
      %v586 = vsub.f32 %v309, %v585
      %587 = vmatprep.subr.mxu0 %v586
      %v588 = vand.u32 %v308, 4294901760
      %v589 = vsub.f32 %v308, %v588
      %590 = vmatpush1.msra.mxu0 %v589
      %v591 = vand.u32 %v311, 4294901760
      %v592 = vsub.f32 %v311, %v591
      %593 = vmatprep.subr.mxu0 %v592
      %v594 = vand.u32 %v310, 4294901760
      %v595 = vsub.f32 %v310, %v594
      %596 = vmatpush1.msra.mxu0 %v595
      %v597 = vand.u32 %v313, 4294901760
      %v598 = vsub.f32 %v313, %v597
      %599 = vmatprep.subr.mxu0 %v598
      %v600 = vand.u32 %v312, 4294901760
      %v601 = vsub.f32 %v312, %v600
      %602 = vmatpush1.msra.mxu0 %v601
      %v603 = vand.u32 %v315, 4294901760
      %v604 = vsub.f32 %v315, %v603
      %605 = vmatprep.subr.mxu0 %v604
      %v606 = vand.u32 %v314, 4294901760
      %v607 = vsub.f32 %v314, %v606
      %608 = vmatpush1.msra.mxu0 %v607
      %v609 = vand.u32 %v317, 4294901760
      %v610 = vsub.f32 %v317, %v609
      %611 = vmatprep.subr.mxu0 %v610
      %v612 = vand.u32 %v316, 4294901760
      %v613 = vsub.f32 %v316, %v612
      %614 = vmatpush1.msra.mxu0 %v613
      %615 = vmatprep.subr.mxu0 0.0
      %616 = vmatpush1.msra.mxu0 0.0
      %617 = vmatprep.subr.mxu0 0.0
      %618 = vmatpush1.msra.mxu0 0.0
      %619 = vmatprep.subr.mxu0 0.0
      %620 = vmatpush1.msra.mxu0 0.0
      %621 = vmatprep.subr.mxu0 0.0
      %622 = vmatpush1.msra.mxu0 0.0
      %623 = vmatprep.subr.mxu0 0.0
      %624 = vmatpush1.msra.mxu0 0.0
      %625 = vmatprep.subr.mxu0 0.0
      %626 = vmatpush1.msra.mxu0 0.0
      %627 = vmatprep.subr.mxu0 0.0
      %628 = vmatpush1.msra.mxu0 0.0
      %629 = vmatprep.subr.mxu0 0.0
      %630 = vmatpush1.msra.mxu0 0.0
      %631 = vmatprep.subr.mxu0 0.0
      %632 = vmatpush1.msra.mxu0 0.0
      %633 = vmatprep.subr.mxu0 0.0
      %634 = vmatpush1.msra.mxu0 0.0
      %635 = vmatprep.subr.mxu0 0.0
      %636 = vmatpush1.msra.mxu0 0.0
      %637 = vmatprep.subr.mxu0 0.0
      %638 = vmatpush1.msra.mxu0 0.0
      %639 = vmatprep.subr.mxu0 0.0
      %640 = vmatpush1.msra.mxu0 0.0
      %641 = vmatprep.subr.mxu0 0.0
      %642 = vmatpush1.msra.mxu0 0.0
      %643 = vmatprep.subr.mxu0 0.0
      %644 = vmatpush1.msra.mxu0 0.0
      %645 = vmatprep.subr.mxu0 0.0
      %646 = vmatpush1.msra.mxu0 0.0
      %647 = vmatprep.subr.mxu0 0.0
      %648 = vmatpush1.msra.mxu0 0.0
      %649 = vmatprep.subr.mxu0 0.0
      %650 = vmatpush1.msra.mxu0 0.0
      %651 = vmatprep.subr.mxu0 0.0
      %652 = vmatpush1.msra.mxu0 0.0
      %653 = vmatprep.subr.mxu0 0.0
      %654 = vmatpush1.msra.mxu0 0.0
      %655 = vmatprep.subr.mxu0 0.0
      %656 = vmatpush1.msra.mxu0 0.0
      %657 = vmatprep.subr.mxu0 0.0
      %658 = vmatpush1.msra.mxu0 0.0
      %659 = vmatprep.subr.mxu0 0.0
      %660 = vmatpush1.msra.mxu0 0.0
      %661 = vmatprep.subr.mxu0 0.0
      %662 = vmatpush1.msra.mxu0 0.0
      %663 = vmatprep.mubr.f32.mxu0 0.0
      %v664 = vand.u32 %v321, 4294901760
      %v665 = vsub.f32 %v321, %v664
      %666 = vmatmul.mubr.f32.gmra.mrb[0].mxu0 %v665
      %v667 = vpop.f32.mrb[0].mxu0
      %v668 = vadd.f32 %v563, %v667
      %v669 = vpop.f32.mrb[0].mxu0
      %v670 = vadd.f32 %v565, %v669
      %671 = vdwg.mxu0
      %v672 = vand.u32 %v303, 4294901760
      %673 = vmatprep.subr.mxu0 %v672
      %v674 = vand.u32 %v302, 4294901760
      %675 = vmatpush1.msra.mxu0 %v674
      %v676 = vand.u32 %v305, 4294901760
      %677 = vmatprep.subr.mxu0 %v676
      %v678 = vand.u32 %v304, 4294901760
      %679 = vmatpush1.msra.mxu0 %v678
      %v680 = vand.u32 %v307, 4294901760
      %681 = vmatprep.subr.mxu0 %v680
      %v682 = vand.u32 %v306, 4294901760
      %683 = vmatpush1.msra.mxu0 %v682
      %v684 = vand.u32 %v309, 4294901760
      %685 = vmatprep.subr.mxu0 %v684
      %v686 = vand.u32 %v308, 4294901760
      %687 = vmatpush1.msra.mxu0 %v686
      %v688 = vand.u32 %v311, 4294901760
      %689 = vmatprep.subr.mxu0 %v688
      %v690 = vand.u32 %v310, 4294901760
      %691 = vmatpush1.msra.mxu0 %v690
      %v692 = vand.u32 %v313, 4294901760
      %693 = vmatprep.subr.mxu0 %v692
      %v694 = vand.u32 %v312, 4294901760
      %695 = vmatpush1.msra.mxu0 %v694
      %v696 = vand.u32 %v315, 4294901760
      %697 = vmatprep.subr.mxu0 %v696
      %v698 = vand.u32 %v314, 4294901760
      %699 = vmatpush1.msra.mxu0 %v698
      %v700 = vand.u32 %v317, 4294901760
      %701 = vmatprep.subr.mxu0 %v700
      %v702 = vand.u32 %v316, 4294901760
      %703 = vmatpush1.msra.mxu0 %v702
      %704 = vmatprep.subr.mxu0 0.0
      %705 = vmatpush1.msra.mxu0 0.0
      %706 = vmatprep.subr.mxu0 0.0
      %707 = vmatpush1.msra.mxu0 0.0
      %708 = vmatprep.subr.mxu0 0.0
      %709 = vmatpush1.msra.mxu0 0.0
      %710 = vmatprep.subr.mxu0 0.0
      %711 = vmatpush1.msra.mxu0 0.0
      %712 = vmatprep.subr.mxu0 0.0
      %713 = vmatpush1.msra.mxu0 0.0
      %714 = vmatprep.subr.mxu0 0.0
      %715 = vmatpush1.msra.mxu0 0.0
      %716 = vmatprep.subr.mxu0 0.0
      %717 = vmatpush1.msra.mxu0 0.0
      %718 = vmatprep.subr.mxu0 0.0
      %719 = vmatpush1.msra.mxu0 0.0
      %720 = vmatprep.subr.mxu0 0.0
      %721 = vmatpush1.msra.mxu0 0.0
      %722 = vmatprep.subr.mxu0 0.0
      %723 = vmatpush1.msra.mxu0 0.0
      %724 = vmatprep.subr.mxu0 0.0
      %725 = vmatpush1.msra.mxu0 0.0
      %726 = vmatprep.subr.mxu0 0.0
      %727 = vmatpush1.msra.mxu0 0.0
      %728 = vmatprep.subr.mxu0 0.0
      %729 = vmatpush1.msra.mxu0 0.0
      %730 = vmatprep.subr.mxu0 0.0
      %731 = vmatpush1.msra.mxu0 0.0
      %732 = vmatprep.subr.mxu0 0.0
      %733 = vmatpush1.msra.mxu0 0.0
      %734 = vmatprep.subr.mxu0 0.0
      %735 = vmatpush1.msra.mxu0 0.0
      %736 = vmatprep.subr.mxu0 0.0
      %737 = vmatpush1.msra.mxu0 0.0
      %738 = vmatprep.subr.mxu0 0.0
      %739 = vmatpush1.msra.mxu0 0.0
      %740 = vmatprep.subr.mxu0 0.0
      %741 = vmatpush1.msra.mxu0 0.0
      %742 = vmatprep.subr.mxu0 0.0
      %743 = vmatpush1.msra.mxu0 0.0
      %744 = vmatprep.subr.mxu0 0.0
      %745 = vmatpush1.msra.mxu0 0.0
      %746 = vmatprep.subr.mxu0 0.0
      %747 = vmatpush1.msra.mxu0 0.0
      %748 = vmatprep.subr.mxu0 0.0
      %749 = vmatpush1.msra.mxu0 0.0
      %750 = vmatprep.subr.mxu0 0.0
      %751 = vmatpush1.msra.mxu0 0.0
      %752 = vmatprep.mubr.f32.mxu0 0.0
      %v753 = vand.u32 %v321, 4294901760
      %v754 = vsub.f32 %v321, %v753
      %v755 = vand.u32 %v754, 4294901760
      %756 = vmatmul.mubr.f32.gmra.mrb[0].mxu0 %v755
      %v757 = vpop.f32.mrb[0].mxu0
      %v758 = vadd.f32 %v668, %v757
      %v759 = vpop.f32.mrb[0].mxu0
      %v760 = vadd.f32 %v670, %v759
      %761 = vdwg.mxu0
      %v762 = vand.u32 %v303, 4294901760
      %v763 = vsub.f32 %v303, %v762
      %v764 = vand.u32 %v763, 4294901760
      %765 = vmatprep.subr.mxu0 %v764
      %v766 = vand.u32 %v302, 4294901760
      %v767 = vsub.f32 %v302, %v766
      %v768 = vand.u32 %v767, 4294901760
      %769 = vmatpush1.msra.mxu0 %v768
      %v770 = vand.u32 %v305, 4294901760
      %v771 = vsub.f32 %v305, %v770
      %v772 = vand.u32 %v771, 4294901760
      %773 = vmatprep.subr.mxu0 %v772
      %v774 = vand.u32 %v304, 4294901760
      %v775 = vsub.f32 %v304, %v774
      %v776 = vand.u32 %v775, 4294901760
      %777 = vmatpush1.msra.mxu0 %v776
      %v778 = vand.u32 %v307, 4294901760
      %v779 = vsub.f32 %v307, %v778
      %v780 = vand.u32 %v779, 4294901760
      %781 = vmatprep.subr.mxu0 %v780
      %v782 = vand.u32 %v306, 4294901760
      %v783 = vsub.f32 %v306, %v782
      %v784 = vand.u32 %v783, 4294901760
      %785 = vmatpush1.msra.mxu0 %v784
      %v786 = vand.u32 %v309, 4294901760
      %v787 = vsub.f32 %v309, %v786
      %v788 = vand.u32 %v787, 4294901760
      %789 = vmatprep.subr.mxu0 %v788
      %v790 = vand.u32 %v308, 4294901760
      %v791 = vsub.f32 %v308, %v790
      %v792 = vand.u32 %v791, 4294901760
      %793 = vmatpush1.msra.mxu0 %v792
      %v794 = vand.u32 %v311, 4294901760
      %v795 = vsub.f32 %v311, %v794
      %v796 = vand.u32 %v795, 4294901760
      %797 = vmatprep.subr.mxu0 %v796
      %v798 = vand.u32 %v310, 4294901760
      %v799 = vsub.f32 %v310, %v798
      %v800 = vand.u32 %v799, 4294901760
      %801 = vmatpush1.msra.mxu0 %v800
      %v802 = vand.u32 %v313, 4294901760
      %v803 = vsub.f32 %v313, %v802
      %v804 = vand.u32 %v803, 4294901760
      %805 = vmatprep.subr.mxu0 %v804
      %v806 = vand.u32 %v312, 4294901760
      %v807 = vsub.f32 %v312, %v806
      %v808 = vand.u32 %v807, 4294901760
      %809 = vmatpush1.msra.mxu0 %v808
      %v810 = vand.u32 %v315, 4294901760
      %v811 = vsub.f32 %v315, %v810
      %v812 = vand.u32 %v811, 4294901760
      %813 = vmatprep.subr.mxu0 %v812
      %v814 = vand.u32 %v314, 4294901760
      %v815 = vsub.f32 %v314, %v814
      %v816 = vand.u32 %v815, 4294901760
      %817 = vmatpush1.msra.mxu0 %v816
      %v818 = vand.u32 %v317, 4294901760
      %v819 = vsub.f32 %v317, %v818
      %v820 = vand.u32 %v819, 4294901760
      %821 = vmatprep.subr.mxu0 %v820
      %v822 = vand.u32 %v316, 4294901760
      %v823 = vsub.f32 %v316, %v822
      %v824 = vand.u32 %v823, 4294901760
      %825 = vmatpush1.msra.mxu0 %v824
      %826 = vmatprep.subr.mxu0 0.0
      %827 = vmatpush1.msra.mxu0 0.0
      %828 = vmatprep.subr.mxu0 0.0
      %829 = vmatpush1.msra.mxu0 0.0
      %830 = vmatprep.subr.mxu0 0.0
      %831 = vmatpush1.msra.mxu0 0.0
      %832 = vmatprep.subr.mxu0 0.0
      %833 = vmatpush1.msra.mxu0 0.0
      %834 = vmatprep.subr.mxu0 0.0
      %835 = vmatpush1.msra.mxu0 0.0
      %836 = vmatprep.subr.mxu0 0.0
      %837 = vmatpush1.msra.mxu0 0.0
      %838 = vmatprep.subr.mxu0 0.0
      %839 = vmatpush1.msra.mxu0 0.0
      %840 = vmatprep.subr.mxu0 0.0
      %841 = vmatpush1.msra.mxu0 0.0
      %842 = vmatprep.subr.mxu0 0.0
      %843 = vmatpush1.msra.mxu0 0.0
      %844 = vmatprep.subr.mxu0 0.0
      %845 = vmatpush1.msra.mxu0 0.0
      %846 = vmatprep.subr.mxu0 0.0
      %847 = vmatpush1.msra.mxu0 0.0
      %848 = vmatprep.subr.mxu0 0.0
      %849 = vmatpush1.msra.mxu0 0.0
      %850 = vmatprep.subr.mxu0 0.0
      %851 = vmatpush1.msra.mxu0 0.0
      %852 = vmatprep.subr.mxu0 0.0
      %853 = vmatpush1.msra.mxu0 0.0
      %854 = vmatprep.subr.mxu0 0.0
      %855 = vmatpush1.msra.mxu0 0.0
      %856 = vmatprep.subr.mxu0 0.0
      %857 = vmatpush1.msra.mxu0 0.0
      %858 = vmatprep.subr.mxu0 0.0
      %859 = vmatpush1.msra.mxu0 0.0
      %860 = vmatprep.subr.mxu0 0.0
      %861 = vmatpush1.msra.mxu0 0.0
      %862 = vmatprep.subr.mxu0 0.0
      %863 = vmatpush1.msra.mxu0 0.0
      %864 = vmatprep.subr.mxu0 0.0
      %865 = vmatpush1.msra.mxu0 0.0
      %866 = vmatprep.subr.mxu0 0.0
      %867 = vmatpush1.msra.mxu0 0.0
      %868 = vmatprep.subr.mxu0 0.0
      %869 = vmatpush1.msra.mxu0 0.0
      %870 = vmatprep.subr.mxu0 0.0
      %871 = vmatpush1.msra.mxu0 0.0
      %872 = vmatprep.subr.mxu0 0.0
      %873 = vmatpush1.msra.mxu0 0.0
      %874 = vmatprep.mubr.f32.mxu0 0.0
      %v875 = vand.u32 %v321, 4294901760
      %876 = vmatmul.mubr.f32.gmra.mrb[0].mxu0 %v875
      %v877 = vpop.f32.mrb[0].mxu0
      %v878 = vadd.f32 %v758, %v877
      %v879 = vpop.f32.mrb[0].mxu0
      %v880 = vadd.f32 %v760, %v879
      %881 = vdwg.mxu0
      %v882 = vand.u32 %v303, 4294901760
      %883 = vmatprep.subr.mxu0 %v882
      %v884 = vand.u32 %v302, 4294901760
      %885 = vmatpush1.msra.mxu0 %v884
      %v886 = vand.u32 %v305, 4294901760
      %887 = vmatprep.subr.mxu0 %v886
      %v888 = vand.u32 %v304, 4294901760
      %889 = vmatpush1.msra.mxu0 %v888
      %v890 = vand.u32 %v307, 4294901760
      %891 = vmatprep.subr.mxu0 %v890
      %v892 = vand.u32 %v306, 4294901760
      %893 = vmatpush1.msra.mxu0 %v892
      %v894 = vand.u32 %v309, 4294901760
      %895 = vmatprep.subr.mxu0 %v894
      %v896 = vand.u32 %v308, 4294901760
      %897 = vmatpush1.msra.mxu0 %v896
      %v898 = vand.u32 %v311, 4294901760
      %899 = vmatprep.subr.mxu0 %v898
      %v900 = vand.u32 %v310, 4294901760
      %901 = vmatpush1.msra.mxu0 %v900
      %v902 = vand.u32 %v313, 4294901760
      %903 = vmatprep.subr.mxu0 %v902
      %v904 = vand.u32 %v312, 4294901760
      %905 = vmatpush1.msra.mxu0 %v904
      %v906 = vand.u32 %v315, 4294901760
      %907 = vmatprep.subr.mxu0 %v906
      %v908 = vand.u32 %v314, 4294901760
      %909 = vmatpush1.msra.mxu0 %v908
      %v910 = vand.u32 %v317, 4294901760
      %911 = vmatprep.subr.mxu0 %v910
      %v912 = vand.u32 %v316, 4294901760
      %913 = vmatpush1.msra.mxu0 %v912
      %914 = vmatprep.subr.mxu0 0.0
      %915 = vmatpush1.msra.mxu0 0.0
      %916 = vmatprep.subr.mxu0 0.0
      %917 = vmatpush1.msra.mxu0 0.0
      %918 = vmatprep.subr.mxu0 0.0
      %919 = vmatpush1.msra.mxu0 0.0
      %920 = vmatprep.subr.mxu0 0.0
      %921 = vmatpush1.msra.mxu0 0.0
      %922 = vmatprep.subr.mxu0 0.0
      %923 = vmatpush1.msra.mxu0 0.0
      %924 = vmatprep.subr.mxu0 0.0
      %925 = vmatpush1.msra.mxu0 0.0
      %926 = vmatprep.subr.mxu0 0.0
      %927 = vmatpush1.msra.mxu0 0.0
      %928 = vmatprep.subr.mxu0 0.0
      %929 = vmatpush1.msra.mxu0 0.0
      %930 = vmatprep.subr.mxu0 0.0
      %931 = vmatpush1.msra.mxu0 0.0
      %932 = vmatprep.subr.mxu0 0.0
      %933 = vmatpush1.msra.mxu0 0.0
      %934 = vmatprep.subr.mxu0 0.0
      %935 = vmatpush1.msra.mxu0 0.0
      %936 = vmatprep.subr.mxu0 0.0
      %937 = vmatpush1.msra.mxu0 0.0
      %938 = vmatprep.subr.mxu0 0.0
      %939 = vmatpush1.msra.mxu0 0.0
      %940 = vmatprep.subr.mxu0 0.0
      %941 = vmatpush1.msra.mxu0 0.0
      %942 = vmatprep.subr.mxu0 0.0
      %943 = vmatpush1.msra.mxu0 0.0
      %944 = vmatprep.subr.mxu0 0.0
      %945 = vmatpush1.msra.mxu0 0.0
      %946 = vmatprep.subr.mxu0 0.0
      %947 = vmatpush1.msra.mxu0 0.0
      %948 = vmatprep.subr.mxu0 0.0
      %949 = vmatpush1.msra.mxu0 0.0
      %950 = vmatprep.subr.mxu0 0.0
      %951 = vmatpush1.msra.mxu0 0.0
      %952 = vmatprep.subr.mxu0 0.0
      %953 = vmatpush1.msra.mxu0 0.0
      %954 = vmatprep.subr.mxu0 0.0
      %955 = vmatpush1.msra.mxu0 0.0
      %956 = vmatprep.subr.mxu0 0.0
      %957 = vmatpush1.msra.mxu0 0.0
      %958 = vmatprep.subr.mxu0 0.0
      %959 = vmatpush1.msra.mxu0 0.0
      %960 = vmatprep.subr.mxu0 0.0
      %961 = vmatpush1.msra.mxu0 0.0
      %962 = vmatprep.mubr.f32.mxu0 0.0
      %v963 = vand.u32 %v321, 4294901760
      %964 = vmatmul.mubr.f32.gmra.mrb[0].mxu0 %v963
      %v965 = vpop.f32.mrb[0].mxu0
      %v966 = vadd.f32 %v878, %v965
      %v967 = vpop.f32.mrb[0].mxu0
      %v968 = vadd.f32 %v880, %v967
      %969 = vdwg.mxu0
      %v972 = vcombine.low %v966, %v968
      %974 = vst [vmem:[%s230] sm:$0xff] %v972
      %s975 = smul.u32 2, %s18
      %p976 = scmp.lt.s32.totalorder %s19, 1
      %s977 = scalar_select %p976, %s19, 1
      %p978 = scmp.lt.s32.totalorder %s975, 1
      %s979 = scalar_select %p978, %s975, 1
      %s980 = smul.addr %s977, 2
      %s981 = sadd.s32 %s979, %s980
      %s982 = smul.addr %s981, 4
      %s983 = scalar_lea.vmem %s3, %s982
      // Predicated region
      $region33: #{heterogeneous_filter.1} parent=31 // pred_check
        %p984 = pneg %p121
      $region34: #{heterogeneous_filter.1} parent=31 // pred_check_branch
        %986 = sbr.rel (%p984) target = $region36
      $region35: #{heterogeneous_filter.1} parent=31 // pred_region
        %s987 = smul.u32 2, %s18
      $region36: #{heterogeneous_filter.1} parent=31 // pred_fallthru
        _
    $region32: #{heterogeneous_filter.1} parent=5 // pred_fallthru
      _
    %p988 = scmp.le.s32.totalorder 2, %s9
    // Predicated region
    $region37: #{heterogeneous_filter.1} parent=5 // pred_check
      %p989 = pneg %p988
    $region38: #{heterogeneous_filter.1} parent=5 // pred_check_branch
      %991 = sbr.rel (%p989) target = $region40
    $region39: #{heterogeneous_filter.1} parent=5 // pred_region
      %s992 = ssub.s32 %s9, 2
      // Predicated region
      $region41: #{heterogeneous_filter.1} parent=39 // pred_check
        %p993 = pneg %p127
      $region42: #{heterogeneous_filter.1} parent=39 // pred_check_branch
        %995 = sbr.rel (%p993) target = $region44
      $region43: #{heterogeneous_filter.1} parent=39 // pred_region
        %s996 = smul.u32 2, %s20
        %p997 = scmp.lt.s32.totalorder %s21, 1
        %s998 = scalar_select %p997, %s21, 1
        %p999 = scmp.lt.s32.totalorder %s996, 1
        %s1000 = scalar_select %p999, %s996, 1
        %s1001 = smul.addr %s998, 2
        %s1002 = sadd.s32 %s1000, %s1001
        %s1003 = smul.addr %s1002, 4
        %s1004 = scalar_lea.vmem %s3, %s1003
      $region44: #{heterogeneous_filter.1} parent=39 // pred_fallthru
        _
    $region40: #{heterogeneous_filter.1} parent=5 // pred_fallthru
      _
  $region6: #{heterogeneous_filter.1} parent=0 // loop_footer
    %s13 = sadd.s32 1, %s9
  $region7: #{heterogeneous_filter.1} parent=0 // loop_footer_branch
    %8 = sbr.rel target = $region3
  $region8: #{heterogeneous_filter.1} parent=0 // loop_exit
    _

</llo_original>
